<compile_context>
chip_gen: v7x
topology: tpu7x:2x2x1
jax: 0.10.0
libtpu: 0.0.40
codegen_flags: <defaults>
</compile_context>

<pallas_src>
import math

import jax
import jax.numpy as jnp
from jax.experimental import pallas as pl
from jax.experimental.pallas import tpu as pltpu


def _round_up(x, m):
    return (x + m - 1) // m * m


def _largest_divisor_tile(total, cap, step):
    """Largest multiple of `step` that divides `total` and is <= cap.
    `total` must itself be a multiple of `step`."""
    best = step
    t = step
    while t <= min(total, cap):
        if total % t == 0:
            best = t
        t += step
    return best


def _vmem_limit_bytes():
    # ~75% of physical VMEM: 96 MiB on v5e/v6e, 48 MiB on v7x.
    try:
        cap = int(pltpu.get_tpu_info().vmem_capacity_bytes)
    except Exception:  # interpret mode / unknown chip -> conservative
        cap = 64 * 1024 * 1024
    return cap * 3 // 4


def _pick_tiles(M, K, F, *, split_for_megacore=True):
    """128-granular padding for K/F (16 for M) + divisor tiles."""
    Kp = _round_up(K, 128)
    Fp = _round_up(F, 128)
    Mp = _round_up(max(M, 1), 16)

    tk = _largest_divisor_tile(Kp, 512, 128)
    # One j tile when the (padded) forecast dim fits: X streamed exactly once.
    tn = Fp if Fp <= 768 else _largest_divisor_tile(Fp, 512, 128)
    # Large M tiles cut W re-streaming (W is re-read Mp/tm times).
    tm = Mp if Mp <= 512 else _largest_divisor_tile(Mp, 512, 16)

    # v7x has 2 TensorCores that shard only along 'parallel' grid axes: if both
    # parallel extents would be 1 and M is non-trivial, split M into 2 tiles
    # (trades one extra W stream for using both cores).
    if split_for_megacore and Mp // tm == 1 and Fp // tn == 1 and Mp >= 32:
        Mp = _round_up(Mp, 32)
        tm = Mp // 2
    return Mp, Kp, Fp, tm, tk, tn


# --------------------- shared-weight path (individual=False) -----------------
def _shared_head(x2d, w, b, out_dtype, compute_dtype):
    """x2d: [M, K] (input dtype), w: [K, F], b: [F] (f32)  ->  [M, F]."""
    M, K = x2d.shape
    _, F = w.shape
    Mp, Kp, Fp, tm, tk, tn = _pick_tiles(M, K, F)

    # Only materialise padded copies when padding is actually required.
    if (Mp, Kp) != (M, K):
        x2d = jnp.pad(x2d, ((0, Mp - M), (0, Kp - K)))
    w = w.astype(compute_dtype)          # re-streamed operand -> bf16 default
    if (Kp, Fp) != (K, F):
        w = jnp.pad(w, ((0, Kp - K), (0, Fp - F)))
    b2 = b.reshape(1, F)
    if Fp != F:
        b2 = jnp.pad(b2, ((0, 0), (0, Fp - F)))

    grid = (Mp // tm, Fp // tn, Kp // tk)
    x_bytes = jnp.dtype(x2d.dtype).itemsize
    w_bytes = jnp.dtype(compute_dtype).itemsize
    o_bytes = jnp.dtype(out_dtype).itemsize

    def kernel(x_ref, w_ref, b_ref, o_ref, acc_ref):
        k = pl.program_id(2)

        @pl.when(k == 0)
        def _():
            acc_ref[...] = jnp.zeros_like(acc_ref)

        # X is loaded in its HBM dtype and cast to the compute dtype in VMEM
        # (one f32 X pass beats an extra wrapper-side cast pass since X is
        # streamed once); accumulation stays f32.
        acc_ref[...] += jnp.dot(x_ref[...].astype(compute_dtype), w_ref[...],
                                preferred_element_type=jnp.float32)

        @pl.when(k == pl.num_programs(2) - 1)
        def _():
            o_ref[...] = (acc_ref[...] + b_ref[...]).astype(o_ref.dtype)

    out = pl.pallas_call(
        kernel,
        out_shape=jax.ShapeDtypeStruct((Mp, Fp), out_dtype),
        grid_spec=pltpu.PrefetchScalarGridSpec(
            num_scalar_prefetch=0,
            grid=grid,
            in_specs=[
                pl.BlockSpec((tm, tk), lambda i, j, k: (i, k)),
                pl.BlockSpec((tk, tn), lambda i, j, k: (k, j)),
                pl.BlockSpec((1, tn), lambda i, j, k: (0, j)),
            ],
            out_specs=pl.BlockSpec((tm, tn), lambda i, j, k: (i, j)),
            scratch_shapes=[pltpu.VMEM((tm, tn), jnp.float32)],
        ),
        compiler_params=pltpu.CompilerParams(
            dimension_semantics=("parallel", "parallel", "arbitrary"),
            vmem_limit_bytes=_vmem_limit_bytes()),
        cost_estimate=pl.CostEstimate(
            flops=2 * Mp * Kp * Fp,
            transcendentals=0,
            bytes_accessed=(Mp * Kp * x_bytes * (Fp // tn)
                            + Kp * Fp * w_bytes * (Mp // tm)
                            + Mp * Fp * o_bytes)),
    )(x2d, w, b2)
    if (Mp, Fp) != (M, F):
        out = out[:M, :F]
    return out


# --------------------- per-variable path (individual=True) -------------------
def _individual_head(x_vb, w, b, out_dtype, compute_dtype):
    """x_vb: [nvars, M, K], w: [nvars, K, F], b: [nvars, F] -> [nvars, M, F]."""
    nvars, M, K = x_vb.shape
    _, _, F = w.shape
    # nvars already provides a parallel axis -> no megacore M-split needed.
    Mp, Kp, Fp, tm, tk, tn = _pick_tiles(M, K, F, split_for_megacore=False)

    if (Mp, Kp) != (M, K):
        x_vb = jnp.pad(x_vb, ((0, 0), (0, Mp - M), (0, Kp - K)))
    w = w.astype(compute_dtype)
    if (Kp, Fp) != (K, F):
        w = jnp.pad(w, ((0, 0), (0, Kp - K), (0, Fp - F)))
    b3 = b.reshape(nvars, 1, F)
    if Fp != F:
        b3 = jnp.pad(b3, ((0, 0), (0, 0), (0, Fp - F)))

    mt = Mp // tm                      # M tiles per variable
    grid = (nvars * mt, Fp // tn, Kp // tk)   # fold (nvars, m-tile) -> 1 axis
    x_bytes = jnp.dtype(x_vb.dtype).itemsize
    w_bytes = jnp.dtype(compute_dtype).itemsize
    o_bytes = jnp.dtype(out_dtype).itemsize

    # NOTE: for small bs the [tm, tk] LHS underfills the MXU rows; this path is
    # memory-bound on the per-variable weights anyway, so it stays acceptable.
    def kernel(x_ref, w_ref, b_ref, o_ref, acc_ref):
        k = pl.program_id(2)

        @pl.when(k == 0)
        def _():
            acc_ref[...] = jnp.zeros_like(acc_ref)

        acc_ref[...] += jnp.dot(x_ref[0].astype(compute_dtype), w_ref[0],
                                preferred_element_type=jnp.float32)

        @pl.when(k == pl.num_programs(2) - 1)
        def _():
            o_ref[0] = (acc_ref[...] + b_ref[0]).astype(o_ref.dtype)

    out = pl.pallas_call(
        kernel,
        out_shape=jax.ShapeDtypeStruct((nvars, Mp, Fp), out_dtype),
        grid_spec=pltpu.PrefetchScalarGridSpec(
            num_scalar_prefetch=0,
            grid=grid,
            in_specs=[
                pl.BlockSpec((1, tm, tk), lambda a, j, k: (a // mt, a % mt, k)),
                pl.BlockSpec((1, tk, tn), lambda a, j, k: (a // mt, k, j)),
                pl.BlockSpec((1, 1, tn), lambda a, j, k: (a // mt, 0, j)),
            ],
            out_specs=pl.BlockSpec((1, tm, tn),
                                   lambda a, j, k: (a // mt, a % mt, j)),
            scratch_shapes=[pltpu.VMEM((tm, tn), jnp.float32)],
        ),
        compiler_params=pltpu.CompilerParams(
            dimension_semantics=("parallel", "parallel", "arbitrary"),
            vmem_limit_bytes=_vmem_limit_bytes()),
        cost_estimate=pl.CostEstimate(
            flops=2 * nvars * Mp * Kp * Fp,
            transcendentals=0,
            bytes_accessed=nvars * (Mp * Kp * x_bytes * (Fp // tn)
                                    + Kp * Fp * w_bytes * mt
                                    + Mp * Fp * o_bytes)),
    )(x_vb, w, b3)
    if (Mp, Fp) != (M, F):
        out = out[:, :M, :F]
    return out


# --------------------------------- wrapper -----------------------------------
def prediction_head(x, weight, bias, *, individual, compute_dtype=None):
    """
    x:      [bs, nvars, d_model, num_patch]
    weight: [n_w, head_dim, forecast_len]  (n_w = nvars if individual else 1)
    bias:   [n_w, forecast_len]
    returns [bs, forecast_len, nvars]
    """
    bs, nvars, d_model, num_patch = x.shape
    head_dim = d_model * num_patch
    _, _, forecast_len = weight.shape
    out_dtype = x.dtype

    # Default fast path: bf16 MXU compute for f32 inputs (f32 accumulation,
    # f32 bias).  Pass compute_dtype=jnp.float32 for full-precision compute.
    if compute_dtype is None:
        compute_dtype = jnp.bfloat16 if x.dtype == jnp.float32 else x.dtype

    # nn.Flatten(start_dim=-2): contiguous, free reshape.
    x_flat = x.reshape(bs, nvars, head_dim)
    bias_f32 = bias.astype(jnp.float32)   # added onto the f32 accumulator

    if individual:
        # Separate Linear per variable.  This transpose is one X-sized HBM
        # pass; producing [nvars, bs, head_dim] upstream would remove it.
        x_vb = jnp.transpose(x_flat, (1, 0, 2))          # [nvars, bs, head_dim]
        out_vbf = _individual_head(x_vb, weight, bias_f32, out_dtype,
                                   compute_dtype)
        out = jnp.transpose(out_vbf, (1, 2, 0))          # [bs, F, nvars]
    else:
        # Shared Linear: fuse bs*nvars into one big-M matmul (reshape is free).
        x2d = x_flat.reshape(bs * nvars, head_dim)
        out2d = _shared_head(x2d, weight[0], bias_f32[0], out_dtype,
                             compute_dtype)
        # Kept to match the module's [bs, F, nvars] output layout.
        out = jnp.transpose(out2d.reshape(bs, nvars, forecast_len), (0, 2, 1))
    return out


# ------------------------------ params / reference ---------------------------
def init_params(key, individual, n_vars, head_dim, forecast_len):
    """Deterministic nn.Linear-style init: U(-1/sqrt(in), 1/sqrt(in))."""
    n_w = n_vars if individual else 1
    kw, kb = jax.random.split(key)
    bound = 1.0 / math.sqrt(head_dim)
    weight = jax.random.uniform(kw, (n_w, head_dim, forecast_len),
                                jnp.float32, -bound, bound)
    bias = jax.random.uniform(kb, (n_w, forecast_len),
                              jnp.float32, -bound, bound)
    return weight, bias


def _reference(x, weight, bias, individual):
    bs, nvars, d_model, num_patch = x.shape
    z = x.reshape(bs, nvars, d_model * num_patch)
    if individual:
        out = jnp.einsum("bvh,vhf->bvf", z, weight) + bias[None, :, :]
    else:
        out = jnp.einsum("bvh,hf->bvf", z, weight[0]) + bias[0][None, None, :]
    return jnp.transpose(out, (0, 2, 1))


if __name__ == "__main__":
    bs, n_vars, d_model, num_patch, forecast_len = 2, 4, 32, 8, 16
    head_dim = d_model * num_patch

    key = jax.random.PRNGKey(0)
    kx, kp1, kp2 = jax.random.split(key, 3)
    x = jax.random.normal(kx, (bs, n_vars, d_model, num_patch), jnp.float32)

    ok = True
    for individual, kp in ((False, kp1), (True, kp2)):
        weight, bias = init_params(kp, individual, n_vars, head_dim,
                                   forecast_len)
        ref = _reference(x, weight, bias, individual)

        # Exact f32 compute path: tight tolerance.
        out_f32 = prediction_head(x, weight, bias, individual=individual,
                                  compute_dtype=jnp.float32)
        out_f32 = jax.block_until_ready(out_f32)
        assert out_f32.shape == (bs, forecast_len, n_vars)
        ok &= bool(jnp.allclose(out_f32, ref, atol=1e-4, rtol=1e-4))

        # Default fast path (bf16 compute, f32 accumulation): loose tolerance.
        out_fast = prediction_head(x, weight, bias, individual=individual)
        out_fast = jax.block_until_ready(out_fast)
        assert out_fast.shape == (bs, forecast_len, n_vars)
        ok &= bool(jnp.allclose(out_fast.astype(jnp.float32), ref,
                                atol=3e-2, rtol=3e-2))

    if ok:
        print("KERNEL_OK")
</pallas_src>

<mosaic_0001>
module attributes {stable_mosaic.version = 11 : i64} {
  func.func @kernel(%arg0: i32, %arg1: i32, %arg2: i32, %arg3: memref<16x256xf32, #tpu.memory_space<vmem>>, %arg4: memref<256x128xf32, #tpu.memory_space<vmem>>, %arg5: memref<1x128xf32, #tpu.memory_space<vmem>>, %arg6: memref<16x128xf32, #tpu.memory_space<vmem>>, %arg7: memref<16x128xf32, #tpu.memory_space<vmem>>) attributes {dimension_semantics = [#tpu.dimension_semantics<parallel>, #tpu.dimension_semantics<parallel>, #tpu.dimension_semantics<arbitrary>], iteration_bounds = array<i64: 1, 1, 1>, scalar_prefetch = 0 : i64, scratch_operands = 1 : i64, tpu.core_type = #tpu.core_type<tc>, window_params = [{transform_indices = @transform_0, window_bounds = array<i64: 16, 256>}, {transform_indices = @transform_1, window_bounds = array<i64: 256, 128>}, {transform_indices = @transform_2, window_bounds = array<i64: 1, 128>}, {transform_indices = @transform_3, window_bounds = array<i64: 16, 128>}]} {
    %c0_i32 = arith.constant 0 : i32
    %0 = arith.cmpi eq, %arg2, %c0_i32 : i32
    %1 = arith.extui %0 : i1 to i32
    %c0_i32_0 = arith.constant 0 : i32
    %2 = arith.cmpi ne, %1, %c0_i32_0 : i32
    scf.if %2 {
      %cst_10 = arith.constant 0.000000e+00 : f32
      %12 = vector.broadcast %cst_10 : f32 to vector<16x128xf32>
      %c0_11 = arith.constant 0 : index
      %c0_12 = arith.constant 0 : index
      %13 = vector.load %arg7[%c0_11, %c0_12] : memref<16x128xf32, #tpu.memory_space<vmem>>, vector<16x128xf32>
      tpu.vector_store %arg7[%c0_11, %c0_12], %12 {strides = array<i32>} : memref<16x128xf32, #tpu.memory_space<vmem>>, vector<16x128xf32>,
    } else {
    }
    %c0 = arith.constant 0 : index
    %c0_1 = arith.constant 0 : index
    %3 = vector.load %arg7[%c0, %c0_1] : memref<16x128xf32, #tpu.memory_space<vmem>>, vector<16x128xf32>
    %c0_2 = arith.constant 0 : index
    %c0_3 = arith.constant 0 : index
    %4 = vector.load %arg3[%c0_2, %c0_3] : memref<16x256xf32, #tpu.memory_space<vmem>>, vector<16x256xf32>
    %c0_4 = arith.constant 0 : index
    %c0_5 = arith.constant 0 : index
    %5 = vector.load %arg4[%c0_4, %c0_5] : memref<256x128xf32, #tpu.memory_space<vmem>>, vector<256x128xf32>
    %cst = arith.constant dense<0.000000e+00> : vector<16x128xf32>
    %6 = tpu.matmul %4, %5, %cst {dimension_numbers = #tpu.dot_dimension_numbers<[1], [0], [0], [1], [0, 0, 1, 1], [], []>} : vector<16x256xf32>, vector<256x128xf32>, vector<16x128xf32> -> vector<16x128xf32>
    %7 = arith.addf %3, %6 : vector<16x128xf32>
    %c0_6 = arith.constant 0 : index
    %c0_7 = arith.constant 0 : index
    %8 = vector.load %arg7[%c0_6, %c0_7] : memref<16x128xf32, #tpu.memory_space<vmem>>, vector<16x128xf32>
    tpu.vector_store %arg7[%c0_6, %c0_7], %7 {strides = array<i32>} : memref<16x128xf32, #tpu.memory_space<vmem>>, vector<16x128xf32>,
    %c0_i32_8 = arith.constant 0 : i32
    %9 = arith.cmpi eq, %arg2, %c0_i32_8 : i32
    %10 = arith.extui %9 : i1 to i32
    %c0_i32_9 = arith.constant 0 : i32
    %11 = arith.cmpi ne, %10, %c0_i32_9 : i32
    scf.if %11 {
      %c0_10 = arith.constant 0 : index
      %c0_11 = arith.constant 0 : index
      %12 = vector.load %arg7[%c0_10, %c0_11] : memref<16x128xf32, #tpu.memory_space<vmem>>, vector<16x128xf32>
      %c0_12 = arith.constant 0 : index
      %c0_13 = arith.constant 0 : index
      %13 = vector.load %arg5[%c0_12, %c0_13] : memref<1x128xf32, #tpu.memory_space<vmem>>, vector<1x128xf32>
      %14 = vector.broadcast %13 : vector<1x128xf32> to vector<16x128xf32>
      %15 = arith.addf %12, %14 : vector<16x128xf32>
      %c0_14 = arith.constant 0 : index
      %c0_15 = arith.constant 0 : index
      %16 = vector.load %arg6[%c0_14, %c0_15] : memref<16x128xf32, #tpu.memory_space<vmem>>, vector<16x128xf32>
      tpu.vector_store %arg6[%c0_14, %c0_15], %15 {strides = array<i32>} : memref<16x128xf32, #tpu.memory_space<vmem>>, vector<16x128xf32>,
    } else {
    }
    return
  }
  func.func @transform_0(%arg0: i32, %arg1: i32, %arg2: i32) -> (i32, i32) {
    %c0_i32 = arith.constant 0 : i32
    return %arg0, %arg2 : i32, i32
  }
  func.func @transform_1(%arg0: i32, %arg1: i32, %arg2: i32) -> (i32, i32) {
    %c0_i32 = arith.constant 0 : i32
    return %arg2, %arg1 : i32, i32
  }
  func.func @transform_2(%arg0: i32, %arg1: i32, %arg2: i32) -> (i32, i32) {
    %c0_i32 = arith.constant 0 : i32
    %c0_i32_0 = arith.constant 0 : i32
    return %c0_i32, %arg1 : i32, i32
  }
  func.func @transform_3(%arg0: i32, %arg1: i32, %arg2: i32) -> (i32, i32) {
    %c0_i32 = arith.constant 0 : i32
    return %arg0, %arg1 : i32, i32
  }
}

</mosaic_0001>

<llo_original>
// kernel: tpu_custom_call.1
$region0: #{tpu_custom_call.1}
  #allocation0 [shape = 'u32[]', space=smem, size = 0x4, offset = 0x4, fixed_abs, tag = 'smem constant byte address 0x4 - core index']
  #allocation1 [shape = 'u32[144,128]{1,0:T(1,128)}', space=vmem, size = 0x12000, scoped, tag = 'internal scratch']
  #allocation2 [shape = 'f32[16,128]{1,0:T(8,128)}', space=vmem, size = 0x2000, scoped, tag = 'scratch operand']
  %s0 = inlined_call_operand.hbm [shape: f32[16,256], index: 0, kind: input, shape index: {}]
  %s1 = inlined_call_operand.hbm [shape: f32[256,128], index: 1, kind: input, shape index: {}]
  %s2 = inlined_call_operand.vmem [shape: f32[1,128], index: 2, kind: input, shape index: {}]
  %s3 = inlined_call_operand.hbm [shape: f32[16,128], index: 3, kind: output, shape index: {}]
  %s4 = sld [smem:[#allocation0]]
  $region38: #{tpu_custom_call.1} parent=0
    _
  %s6 = ssub.s32 1, %s4
  %s7 = scalar_select 0, %s6, %s4
  $region1: #{tpu_custom_call.1} parent=0
    #allocation3 [shape = 'u8[16384]{0}', space=vmem, size = 0x4000, scoped, tag = 'input window, operand 0, single buffered']
    #allocation4 [shape = 's32[1]{0}', space=sflag, size = 0x4, scoped, tag = 'scoped memory for tpu_custom_call.1']
    #allocation5 [shape = 's32[1]{0}', space=sflag, size = 0x4, scoped, tag = 'scoped memory for tpu_custom_call.1']
    #allocation6 [shape = 'u8[131072]{0}', space=vmem, size = 0x20000, scoped, tag = 'input window, operand 1, single buffered']
    #allocation7 [shape = 's32[1]{0}', space=sflag, size = 0x4, scoped, tag = 'scoped memory for tpu_custom_call.1']
    #allocation8 [shape = 'u8[8192]{0}', space=vmem, size = 0x2000, scoped, tag = 'output window, operand 0, single buffered']
    %8 = vsyncpa [#allocation4], 0
    %9 = vsyncpa [#allocation7], 0
    %10 = vsyncpa [#allocation5], 0
    // Predicated region
    $region2: #{tpu_custom_call.1} parent=1 // pred_check
      _
    $region3: #{tpu_custom_call.1} parent=1 // pred_check_branch
      %12 = sbr.rel (0) target = $region5
    $region4: #{tpu_custom_call.1} parent=1 // pred_region
      %s14 = ssub.s32 512, 512
      %15 = vsyncadd [#allocation4], %s14
      %s16 = sshll.u32 [#allocation3], 4
      %s17 = int_to_ptr.vmem [resolvable:$true] %s16
      %22 = dma.hbm_to_vmem [thread:$0]  %s0, 512, %s17, [#allocation4], 256, 256, 16
    $region5: #{tpu_custom_call.1} parent=1 // pred_fallthru
      _
    // Predicated region
    $region6: #{tpu_custom_call.1} parent=1 // pred_check
      _
    $region7: #{tpu_custom_call.1} parent=1 // pred_check_branch
      %24 = sbr.rel (0) target = $region9
    $region8: #{tpu_custom_call.1} parent=1 // pred_region
      %s26 = ssub.s32 4096, 4096
      %27 = vsyncadd [#allocation7], %s26
      %s28 = sshll.u32 [#allocation6], 4
      %s29 = int_to_ptr.vmem [resolvable:$true] %s28
      %34 = dma.hbm_to_vmem [thread:$0]  %s1, 4096, %s29, [#allocation7], 128, 128, 8
    $region9: #{tpu_custom_call.1} parent=1 // pred_fallthru
      _
    // Predicated region
    $region10: #{tpu_custom_call.1} parent=1 // pred_check
      _
    $region11: #{tpu_custom_call.1} parent=1 // pred_check_branch
      %36 = sbr.rel (0) target = $region13
    $region12: #{tpu_custom_call.1} parent=1 // pred_region
      _
    $region13: #{tpu_custom_call.1} parent=1 // pred_fallthru
      _
    // Predicated region
    $region14: #{tpu_custom_call.1} parent=1 // pred_check
      _
    $region15: #{tpu_custom_call.1} parent=1 // pred_check_branch
      %38 = sbr.rel (0) target = $region17
    $region16: #{tpu_custom_call.1} parent=1 // pred_region
      %39 = dma.done [#allocation4], 512
    $region17: #{tpu_custom_call.1} parent=1 // pred_fallthru
      _
    // Predicated region
    $region18: #{tpu_custom_call.1} parent=1 // pred_check
      _
    $region19: #{tpu_custom_call.1} parent=1 // pred_check_branch
      %41 = sbr.rel (0) target = $region21
    $region20: #{tpu_custom_call.1} parent=1 // pred_region
      %42 = dma.done [#allocation7], 4096
    $region21: #{tpu_custom_call.1} parent=1 // pred_fallthru
      _
    %p43 = scmp.eq.s32.totalorder 0, 0
    // Predicated region
    $region22: #{tpu_custom_call.1} parent=1 // pred_check
      %p44 = pneg %p43
    $region23: #{tpu_custom_call.1} parent=1 // pred_check_branch
      %46 = sbr.rel (%p44) target = $region25
    $region24: #{tpu_custom_call.1} parent=1 // pred_region
      %47 = vst [vmem:[#allocation2] sm:$0xff] 0.0
      %48 = vst [vmem:[#allocation2 + $0x8] sm:$0xff] 0.0
    $region25: #{tpu_custom_call.1} parent=1 // pred_fallthru
      _
    %v49 = vld [vmem:[#allocation2] sm:$0xff]
    %v50 = vld [vmem:[#allocation2 + $0x8] sm:$0xff]
    %v51 = vld [vmem:[#allocation3] sm:$0xff]
    %v52 = vld [vmem:[#allocation3 + $0x8] sm:$0xff]
    %v53 = vld [vmem:[#allocation3 + $0x10] sm:$0xff]
    %v54 = vld [vmem:[#allocation3 + $0x18] sm:$0xff]
    %v55 = vld [vmem:[#allocation6] sm:$0xff]
    %v56 = vld [vmem:[#allocation6 + $0x8] sm:$0xff]
    %v57 = vld [vmem:[#allocation6 + $0x10] sm:$0xff]
    %v58 = vld [vmem:[#allocation6 + $0x18] sm:$0xff]
    %v59 = vld [vmem:[#allocation6 + $0x20] sm:$0xff]
    %v60 = vld [vmem:[#allocation6 + $0x28] sm:$0xff]
    %v61 = vld [vmem:[#allocation6 + $0x30] sm:$0xff]
    %v62 = vld [vmem:[#allocation6 + $0x38] sm:$0xff]
    %v63 = vld [vmem:[#allocation6 + $0x40] sm:$0xff]
    %v64 = vld [vmem:[#allocation6 + $0x48] sm:$0xff]
    %v65 = vld [vmem:[#allocation6 + $0x50] sm:$0xff]
    %v66 = vld [vmem:[#allocation6 + $0x58] sm:$0xff]
    %v67 = vld [vmem:[#allocation6 + $0x60] sm:$0xff]
    %v68 = vld [vmem:[#allocation6 + $0x68] sm:$0xff]
    %v69 = vld [vmem:[#allocation6 + $0x70] sm:$0xff]
    %v70 = vld [vmem:[#allocation6 + $0x78] sm:$0xff]
    %v71 = vld [vmem:[#allocation6 + $0x80] sm:$0xff]
    %v72 = vld [vmem:[#allocation6 + $0x88] sm:$0xff]
    %v73 = vld [vmem:[#allocation6 + $0x90] sm:$0xff]
    %v74 = vld [vmem:[#allocation6 + $0x98] sm:$0xff]
    %v75 = vld [vmem:[#allocation6 + $0xa0] sm:$0xff]
    %v76 = vld [vmem:[#allocation6 + $0xa8] sm:$0xff]
    %v77 = vld [vmem:[#allocation6 + $0xb0] sm:$0xff]
    %v78 = vld [vmem:[#allocation6 + $0xb8] sm:$0xff]
    %v79 = vld [vmem:[#allocation6 + $0xc0] sm:$0xff]
    %v80 = vld [vmem:[#allocation6 + $0xc8] sm:$0xff]
    %v81 = vld [vmem:[#allocation6 + $0xd0] sm:$0xff]
    %v82 = vld [vmem:[#allocation6 + $0xd8] sm:$0xff]
    %v83 = vld [vmem:[#allocation6 + $0xe0] sm:$0xff]
    %v84 = vld [vmem:[#allocation6 + $0xe8] sm:$0xff]
    %v85 = vld [vmem:[#allocation6 + $0xf0] sm:$0xff]
    %v86 = vld [vmem:[#allocation6 + $0xf8] sm:$0xff]
    %87 = vmatprep.subr.mxu0 0.0
    %88 = vmatpush1.msra.mxu0 %v55
    %89 = vmatprep.subr.mxu0 0.0
    %90 = vmatpush1.msra.mxu0 %v56
    %91 = vmatprep.subr.mxu0 0.0
    %92 = vmatpush1.msra.mxu0 %v57
    %93 = vmatprep.subr.mxu0 0.0
    %94 = vmatpush1.msra.mxu0 %v58
    %95 = vmatprep.subr.mxu0 0.0
    %96 = vmatpush1.msra.mxu0 %v59
    %97 = vmatprep.subr.mxu0 0.0
    %98 = vmatpush1.msra.mxu0 %v60
    %99 = vmatprep.subr.mxu0 0.0
    %100 = vmatpush1.msra.mxu0 %v61
    %101 = vmatprep.subr.mxu0 0.0
    %102 = vmatpush1.msra.mxu0 %v62
    %103 = vmatprep.subr.mxu0 0.0
    %104 = vmatpush1.msra.mxu0 %v63
    %105 = vmatprep.subr.mxu0 0.0
    %106 = vmatpush1.msra.mxu0 %v64
    %107 = vmatprep.subr.mxu0 0.0
    %108 = vmatpush1.msra.mxu0 %v65
    %109 = vmatprep.subr.mxu0 0.0
    %110 = vmatpush1.msra.mxu0 %v66
    %111 = vmatprep.subr.mxu0 0.0
    %112 = vmatpush1.msra.mxu0 %v67
    %113 = vmatprep.subr.mxu0 0.0
    %114 = vmatpush1.msra.mxu0 %v68
    %115 = vmatprep.subr.mxu0 0.0
    %116 = vmatpush1.msra.mxu0 %v69
    %117 = vmatprep.subr.mxu0 0.0
    %118 = vmatpush1.msra.mxu0 %v70
    %119 = vmatprep.subr.mxu0 0.0
    %120 = vmatpush1.msra.mxu0 %v71
    %121 = vmatprep.subr.mxu0 0.0
    %122 = vmatpush1.msra.mxu0 %v72
    %123 = vmatprep.subr.mxu0 0.0
    %124 = vmatpush1.msra.mxu0 %v73
    %125 = vmatprep.subr.mxu0 0.0
    %126 = vmatpush1.msra.mxu0 %v74
    %127 = vmatprep.subr.mxu0 0.0
    %128 = vmatpush1.msra.mxu0 %v75
    %129 = vmatprep.subr.mxu0 0.0
    %130 = vmatpush1.msra.mxu0 %v76
    %131 = vmatprep.subr.mxu0 0.0
    %132 = vmatpush1.msra.mxu0 %v77
    %133 = vmatprep.subr.mxu0 0.0
    %134 = vmatpush1.msra.mxu0 %v78
    %135 = vmatprep.subr.mxu0 0.0
    %136 = vmatpush1.msra.mxu0 %v79
    %137 = vmatprep.subr.mxu0 0.0
    %138 = vmatpush1.msra.mxu0 %v80
    %139 = vmatprep.subr.mxu0 0.0
    %140 = vmatpush1.msra.mxu0 %v81
    %141 = vmatprep.subr.mxu0 0.0
    %142 = vmatpush1.msra.mxu0 %v82
    %143 = vmatprep.subr.mxu0 0.0
    %144 = vmatpush1.msra.mxu0 %v83
    %145 = vmatprep.subr.mxu0 0.0
    %146 = vmatpush1.msra.mxu0 %v84
    %147 = vmatprep.subr.mxu0 0.0
    %148 = vmatpush1.msra.mxu0 %v85
    %149 = vmatprep.subr.mxu0 0.0
    %150 = vmatpush1.msra.mxu0 %v86
    %151 = vmatprep.mubr.f32.mxu0 %v52
    %152 = vmatmul.mubr.f32.gmra.mrb[0].mxu0 %v51
    %v153 = vpop.f32.mrb[0].mxu0
    %v154 = vadd.f32 0.0, %v153
    %v155 = vpop.f32.mrb[0].mxu0
    %156 = vmatprep.mubr.f32.mxu0 %v54
    %157 = vmatmul.mubr.f32.gmra.mrb[0].mxu0 %v53
    %v158 = vpop.f32.mrb[0].mxu0
    %v159 = vadd.f32 0.0, %v158
    %v160 = vpop.f32.mrb[0].mxu0
    %161 = vdwg.mxu0
    %v162 = vadd.f32 %v49, %v154
    %v163 = vadd.f32 %v50, %v159
    %164 = vst [vmem:[#allocation2] sm:$0xff] %v162
    %165 = vst [vmem:[#allocation2 + $0x8] sm:$0xff] %v163
    // Predicated region
    $region26: #{tpu_custom_call.1} parent=1 // pred_check
      %p166 = pneg %p43
    $region27: #{tpu_custom_call.1} parent=1 // pred_check_branch
      %168 = sbr.rel (%p166) target = $region29
    $region28: #{tpu_custom_call.1} parent=1 // pred_region
      %v169 = vld [vmem:[#allocation2] sm:$0xff]
      %v170 = vld [vmem:[#allocation2 + $0x8] sm:$0xff]
      %v171 = vld [vmem:[%s2] sm:$0x1]
      %v173 = vlaneseq
      %v174 = vshrl.u32 %v173, 7
      %v175 = vsub.s32 0, %v174
      %v176 = vrot.slane %v171, %v175
      %v178 = vadd.f32 %v169, %v176
      %v179 = vadd.f32 %v170, %v176
      %180 = vst [vmem:[#allocation8] sm:$0xff] %v178
      %181 = vst [vmem:[#allocation8 + $0x8] sm:$0xff] %v179
    $region29: #{tpu_custom_call.1} parent=1 // pred_fallthru
      _
    // Predicated region
    $region30: #{tpu_custom_call.1} parent=1 // pred_check
      _
    $region31: #{tpu_custom_call.1} parent=1 // pred_check_branch
      %183 = sbr.rel (0) target = $region33
    $region32: #{tpu_custom_call.1} parent=1 // pred_region
      %s185 = ssub.s32 256, 256
      %186 = vsyncadd [#allocation5], %s185
      %s187 = sshll.u32 [#allocation8], 4
      %s188 = int_to_ptr.vmem [resolvable:$true] %s187
      %193 = dma.vmem_to_hbm [thread:$0]  %s188, 256, %s3, [#allocation5], 128, 128, 8
    $region33: #{tpu_custom_call.1} parent=1 // pred_fallthru
      _
    // Predicated region
    $region34: #{tpu_custom_call.1} parent=1 // pred_check
      _
    $region35: #{tpu_custom_call.1} parent=1 // pred_check_branch
      %195 = sbr.rel (0) target = $region37
    $region36: #{tpu_custom_call.1} parent=1 // pred_region
      %196 = dma.done [#allocation5], 256
    $region37: #{tpu_custom_call.1} parent=1 // pred_fallthru
      _
    %197 = vsyncpa [#allocation4], 1
    %198 = vsyncpa [#allocation7], 1
    %199 = vsyncpa [#allocation5], 1

</llo_original>
